<compile_context>
chip_gen: v5e
topology: v5e:2x2
jax: 0.10.0
libtpu: 0.0.40
codegen_flags: <defaults>
</compile_context>

<pallas_src>
import functools

import jax
import jax.numpy as jnp
from jax.experimental import pallas as pl
from jax.experimental.pallas import tpu as pltpu


def _transition_kernel(x_ref, wa_ref, ba_ref, wu_ref, o_ref, *, s_valid):
    # x_ref: (TB, S, H)    wa_ref: (H, H) [in, out]   ba_ref: (1, H) f32
    # wu_ref: (H, 2) f32   o_ref:  (TB, 2, S) f32
    TB, S, H = x_ref.shape

    # Flatten batch*seq rows -> one big-M MXU matmul per Linear.  S % 8 == 0
    # is guaranteed by the wrapper, so this reshape is a pure sublane relabel.
    xf = x_ref[...].reshape(TB * S, H)                                # (M, H)
    z = jnp.tanh(jnp.dot(xf, wa_ref[...],
                         preferred_element_type=jnp.float32)
                 + ba_ref[...])                                       # (M, H) f32
    logit = jnp.dot(z, wu_ref[...],
                    preferred_element_type=jnp.float32)               # (M, 2) f32

    # Lane-dense normalization: transpose only the tiny logit tile so S sits
    # on the 128-lane axis for exp / sum / reciprocal / store.
    lt = jnp.swapaxes(logit.reshape(TB, S, 2), 1, 2)                  # (TB, 2, S)
    e = jnp.exp(lt)
    if s_valid != S:  # static: mask padded sequence positions out of the sum
        lane = jax.lax.broadcasted_iota(jnp.int32, e.shape, 2)
        e = jnp.where(lane < s_valid, e, 0.0)
    denom = jnp.sum(e, axis=2, keepdims=True) + 1e-9                  # (TB, 2, 1)
    o_ref[...] = e * pl.reciprocal(denom, approx=True)


def _vmem_capacity_bytes():
    try:
        return int(pltpu.get_tpu_info().vmem_capacity_bytes)
    except Exception:
        return 64 * 1024 * 1024  # conservative fallback (v7x physical VMEM)


def _pick_block_b(B, S, H, x_bytes, budget):
    """Largest batch tile whose VMEM footprint fits `budget` bytes."""
    # Per-batch-row cost of one grid step (double-buffered pipelined blocks
    # plus f32 temporaries).
    per_b = (2 * S * H * x_bytes      # x tile (double-buffered)
             + 2 * S * H * 4          # z / matmul temporaries, f32
             + 2 * 2 * S * 4          # output tile (double-buffered)
             + 4 * 2 * S * 4)         # exp / normalized temporaries
    fixed = 2 * (H * H * x_bytes + H * 4 + H * 2 * 4)  # weights + bias blocks
    avail = max(budget - fixed, per_b)
    tb = int(max(1, min(B, avail // per_b)))
    # Force at least 2 grid steps so ("parallel",) can shard batch tiles
    # across v7x's two TensorCores (costs only ~0.35 us/step elsewhere).
    if B >= 2:
        tb = min(tb, -(-B // 2))
    return tb


def transition_layer_forward(x, attn_weight, attn_bias, u_weight, *,
                             block_b=None, use_bf16_inputs=False):
    """Forward pass of TransitionLayer.

    x:           (B, S, H)
    attn_weight: (H, H)   torch layout (out_features, in_features)
    attn_bias:   (H,)
    u_weight:    (2, H)   torch layout (out_features, in_features)
    returns:     (B, S, 2) float32
    """
    B, S, H = x.shape

    in_dtype = jnp.bfloat16 if use_bf16_inputs else x.dtype
    # Pre-transpose weights once outside the kernel to (in, out) layout.
    wa = jnp.transpose(attn_weight).astype(in_dtype)    # (H, H)
    ba = attn_bias.reshape(1, H).astype(jnp.float32)    # bias added post-acc, f32
    wu = jnp.transpose(u_weight).astype(jnp.float32)    # (H, 2), tiny -> keep f32
    x = x.astype(in_dtype)                              # bf16 halves the HBM x stream

    # Pad S to a multiple of 8 (sublane) so in-kernel reshapes are relabels.
    S_pad = -(-S // 8) * 8
    x_bytes = jnp.dtype(in_dtype).itemsize

    phys = _vmem_capacity_bytes()
    if block_b is None:
        block_b = _pick_block_b(B, S_pad, H, x_bytes, int(phys * 0.6))
    block_b = int(max(1, min(block_b, B)))

    # Pad B up to a multiple of block_b (padded rows are finite garbage and
    # sliced off) instead of shrinking the tile to a divisor of an awkward B.
    B_pad = -(-B // block_b) * block_b
    if (B_pad, S_pad) != (B, S):
        x = jnp.pad(x, ((0, B_pad - B), (0, S_pad - S), (0, 0)))

    grid = (B_pad // block_b,)
    full2 = lambda b: (0, 0)
    kernel = functools.partial(_transition_kernel, s_valid=S)

    out = pl.pallas_call(
        kernel,
        out_shape=jax.ShapeDtypeStruct((B_pad, 2, S_pad), jnp.float32),
        grid_spec=pltpu.PrefetchScalarGridSpec(
            num_scalar_prefetch=0,
            grid=grid,
            in_specs=[
                pl.BlockSpec((block_b, S_pad, H), lambda b: (b, 0, 0)),  # x
                pl.BlockSpec((H, H), full2),                             # attn W^T
                pl.BlockSpec((1, H), full2),                             # attn bias
                pl.BlockSpec((H, 2), full2),                             # u W^T
            ],
            out_specs=pl.BlockSpec((block_b, 2, S_pad), lambda b: (b, 0, 0)),
        ),
        compiler_params=pltpu.CompilerParams(
            dimension_semantics=("parallel",),
            vmem_limit_bytes=int(phys * 0.75)),
    )(x, wa, ba, wu)

    # Strip padding and return torch layout (B, S, 2); the output is tiny so
    # this wrapper transpose is negligible next to the x stream.
    return jnp.transpose(out[:B, :, :S], (0, 2, 1))


def _reference(x, attn_weight, attn_bias, u_weight):
    """Pure-JAX reference mirroring the torch forward semantics."""
    z = jnp.tanh(jnp.einsum('bsh,oh->bso', x, attn_weight) + attn_bias)
    logit = jnp.einsum('bsh,oh->bso', z, u_weight)           # (B, S, 2)
    e = jnp.exp(logit)
    return e / (jnp.sum(e, axis=1, keepdims=True) + 1e-9)


if __name__ == "__main__":
    # Small shapes consistent with the module: x is (batch, seq, hidden_dim).
    batch, seq, hidden = 2, 8, 32

    key = jax.random.PRNGKey(0)
    kx, kw, ku = jax.random.split(key, 3)
    x = jax.random.normal(kx, (batch, seq, hidden), jnp.float32)

    # Match torch init: attn.weight ~ U(-0.01, 0.01), attn.bias = 0,
    # u.weight ~ U(-0.01, 0.01).
    attn_weight = jax.random.uniform(kw, (hidden, hidden), jnp.float32,
                                     minval=-0.01, maxval=0.01)
    attn_bias = jnp.zeros((hidden,), jnp.float32)
    u_weight = jax.random.uniform(ku, (2, hidden), jnp.float32,
                                  minval=-0.01, maxval=0.01)

    ref = _reference(x, attn_weight, attn_bias, u_weight)

    # f32 path
    out = transition_layer_forward(x, attn_weight, attn_bias, u_weight)
    out = jax.block_until_ready(out)
    assert out.shape == (batch, seq, 2), out.shape
    assert jnp.allclose(out, ref, atol=1e-4, rtol=1e-3), "f32 mismatch vs reference"

    # bf16 input/weight path (f32 accumulation & elementwise) — the mem-bound
    # win on all generations; checked at a looser tolerance vs f32 reference.
    out_bf16 = transition_layer_forward(x, attn_weight, attn_bias, u_weight,
                                        use_bf16_inputs=True)
    out_bf16 = jax.block_until_ready(out_bf16)
    assert out_bf16.shape == (batch, seq, 2), out_bf16.shape
    assert jnp.allclose(out_bf16, ref, atol=5e-3, rtol=5e-2), "bf16 mismatch vs reference"

    print("KERNEL_OK")
</pallas_src>

<mosaic_0001>
module attributes {stable_mosaic.version = 11 : i64} {
  func.func @_transition_kernel(%arg0: i32, %arg1: memref<1x8x32xf32, #tpu.memory_space<vmem>>, %arg2: memref<32x32xf32, #tpu.memory_space<vmem>>, %arg3: memref<1x32xf32, #tpu.memory_space<vmem>>, %arg4: memref<32x2xf32, #tpu.memory_space<vmem>>, %arg5: memref<1x2x8xf32, #tpu.memory_space<vmem>>) attributes {dimension_semantics = [#tpu.dimension_semantics<parallel>], iteration_bounds = array<i64: 2>, scalar_prefetch = 0 : i64, scratch_operands = 0 : i64, tpu.core_type = #tpu.core_type<tc>, window_params = [{transform_indices = @transform_0, window_bounds = array<i64: 1, 8, 32>}, {pipeline_mode = #tpu.pipeline_mode<synchronous>, transform_indices = @transform_1, window_bounds = array<i64: 32, 32>}, {pipeline_mode = #tpu.pipeline_mode<synchronous>, transform_indices = @transform_2, window_bounds = array<i64: 1, 32>}, {pipeline_mode = #tpu.pipeline_mode<synchronous>, transform_indices = @transform_3, window_bounds = array<i64: 32, 2>}, {transform_indices = @transform_4, window_bounds = array<i64: 1, 2, 8>}]} {
    %c0 = arith.constant 0 : index
    %c0_0 = arith.constant 0 : index
    %c0_1 = arith.constant 0 : index
    %0 = vector.load %arg1[%c0, %c0_0, %c0_1] : memref<1x8x32xf32, #tpu.memory_space<vmem>>, vector<1x8x32xf32>
    %1 = vector.shape_cast %0 : vector<1x8x32xf32> to vector<8x32xf32>
    %c0_2 = arith.constant 0 : index
    %c0_3 = arith.constant 0 : index
    %2 = vector.load %arg2[%c0_2, %c0_3] : memref<32x32xf32, #tpu.memory_space<vmem>>, vector<32x32xf32>
    %cst = arith.constant dense<0.000000e+00> : vector<8x32xf32>
    %3 = tpu.matmul %1, %2, %cst {dimension_numbers = #tpu.dot_dimension_numbers<[1], [0], [0], [1], [0, 0, 1, 1], [], []>} : vector<8x32xf32>, vector<32x32xf32>, vector<8x32xf32> -> vector<8x32xf32>
    %c0_4 = arith.constant 0 : index
    %c0_5 = arith.constant 0 : index
    %4 = vector.load %arg3[%c0_4, %c0_5] : memref<1x32xf32, #tpu.memory_space<vmem>>, vector<1x32xf32>
    %5 = vector.broadcast %4 : vector<1x32xf32> to vector<8x32xf32>
    %6 = arith.addf %3, %5 : vector<8x32xf32>
    %7 = math.tanh %6 : vector<8x32xf32>
    %c0_6 = arith.constant 0 : index
    %c0_7 = arith.constant 0 : index
    %8 = vector.load %arg4[%c0_6, %c0_7] : memref<32x2xf32, #tpu.memory_space<vmem>>, vector<32x2xf32>
    %cst_8 = arith.constant dense<0.000000e+00> : vector<8x2xf32>
    %9 = tpu.matmul %7, %8, %cst_8 {dimension_numbers = #tpu.dot_dimension_numbers<[1], [0], [0], [1], [0, 0, 1, 1], [], []>} : vector<8x32xf32>, vector<32x2xf32>, vector<8x2xf32> -> vector<8x2xf32>
    %10 = vector.shape_cast %9 : vector<8x2xf32> to vector<1x8x2xf32>
    %11 = tpu.transpose %10, [0, 2, 1] : vector<1x8x2xf32> -> vector<1x2x8xf32>
    %12 = math.exp %11 : vector<1x2x8xf32>
    %cst_9 = arith.constant dense<0.000000e+00> : vector<1x2xf32>
    %13 = vector.multi_reduction <add>, %12, %cst_9 [2] : vector<1x2x8xf32> to vector<1x2xf32>
    %14 = vector.shape_cast %13 : vector<1x2xf32> to vector<1x2x1xf32>
    %cst_10 = arith.constant 9.99999971E-10 : f32
    %15 = vector.broadcast %cst_10 : f32 to vector<1x2x1xf32>
    %16 = arith.addf %14, %15 : vector<1x2x1xf32>
    %17 = tpu.reciprocal %16 {approx = true} : vector<1x2x1xf32> -> vector<1x2x1xf32>
    %18 = vector.broadcast %17 : vector<1x2x1xf32> to vector<1x2x8xf32>
    %19 = arith.mulf %12, %18 : vector<1x2x8xf32>
    %c0_11 = arith.constant 0 : index
    %c0_12 = arith.constant 0 : index
    %c0_13 = arith.constant 0 : index
    %20 = vector.load %arg5[%c0_11, %c0_12, %c0_13] : memref<1x2x8xf32, #tpu.memory_space<vmem>>, vector<1x2x8xf32>
    tpu.vector_store %arg5[%c0_11, %c0_12, %c0_13], %19 {strides = array<i32>} : memref<1x2x8xf32, #tpu.memory_space<vmem>>, vector<1x2x8xf32>,
    return
  }
  func.func @transform_0(%arg0: i32) -> (i32, i32, i32) {
    %c0_i32 = arith.constant 0 : i32
    %c0_i32_0 = arith.constant 0 : i32
    %c0_i32_1 = arith.constant 0 : i32
    return %arg0, %c0_i32, %c0_i32_0 : i32, i32, i32
  }
  func.func @transform_1(%arg0: i32) -> (i32, i32) {
    %c0_i32 = arith.constant 0 : i32
    %c0_i32_0 = arith.constant 0 : i32
    %c0_i32_1 = arith.constant 0 : i32
    return %c0_i32, %c0_i32_0 : i32, i32
  }
  func.func @transform_2(%arg0: i32) -> (i32, i32) {
    %c0_i32 = arith.constant 0 : i32
    %c0_i32_0 = arith.constant 0 : i32
    %c0_i32_1 = arith.constant 0 : i32
    return %c0_i32, %c0_i32_0 : i32, i32
  }
  func.func @transform_3(%arg0: i32) -> (i32, i32) {
    %c0_i32 = arith.constant 0 : i32
    %c0_i32_0 = arith.constant 0 : i32
    %c0_i32_1 = arith.constant 0 : i32
    return %c0_i32, %c0_i32_0 : i32, i32
  }
  func.func @transform_4(%arg0: i32) -> (i32, i32, i32) {
    %c0_i32 = arith.constant 0 : i32
    %c0_i32_0 = arith.constant 0 : i32
    %c0_i32_1 = arith.constant 0 : i32
    return %arg0, %c0_i32, %c0_i32_0 : i32, i32, i32
  }
}

</mosaic_0001>

<llo_original>
// kernel: tpu_custom_call.1
$region0: #{tpu_custom_call.1}
  #allocation0 [shape = 'u32[]', space=smem, size = 0x4, offset = 0x4, fixed_abs, tag = 'smem constant byte address 0x4 - core index']
  #allocation1 [shape = 'u32[72,128]{1,0:T(1,128)}', space=vmem, size = 0x9000, scoped, tag = 'internal scratch']
  %s0 = inlined_call_operand.hbm [shape: f32[2,8,32], index: 0, kind: input, shape index: {}]
  %s1 = inlined_call_operand.vmem [shape: f32[32,32], index: 1, kind: input, shape index: {}]
  %s2 = inlined_call_operand.vmem [shape: f32[1,32], index: 2, kind: input, shape index: {}]
  %s3 = inlined_call_operand.vmem [shape: f32[32,2], index: 3, kind: input, shape index: {}]
  %s4 = inlined_call_operand.hbm [shape: f32[2,2,8], index: 4, kind: output, shape index: {}]
  %s5 = sld [smem:[#allocation0]]
  $region53: #{tpu_custom_call.1} parent=0
    _
  %s7 = ssub.s32 1, %s5
  %s8 = scalar_select 0, %s7, %s5
  $region1: #{tpu_custom_call.1} parent=0
    #allocation2 [shape = 'u8[8192]{0}', space=vmem, size = 0x2000, scoped, tag = 'input window, operand 0']
    #allocation3 [shape = 's32[2]{0}', space=sflag, size = 0x8, scoped, tag = 'scoped memory for tpu_custom_call.1']
    #allocation4 [shape = 's32[2]{0}', space=sflag, size = 0x8, scoped, tag = 'scoped memory for tpu_custom_call.1']
    #allocation5 [shape = 'u8[2048]{0}', space=vmem, size = 0x800, scoped, tag = 'output window, operand 0']
    %9 = vsyncpa [#allocation3], 0
    %s10 = scalar_lea.sflag [#allocation3], 1
    %11 = vsyncpa %s10, 0
    %12 = vsyncpa [#allocation4], 0
    %s13 = scalar_lea.sflag [#allocation4], 1
    %14 = vsyncpa %s13, 0
    loop: start=0, step=1, limit=4
    $region2: #{tpu_custom_call.1} parent=1 // loop_pre_header
      _
    $region3: #{tpu_custom_call.1} parent=1 // loop_header
      %s16 = sphi 0, %s20
      %p17 = scmp.ge.s32.totalorder %s16, 4
      %s26 = sphi 0, %s28
      %s29 = sphi 0, %s26
      %s30 = sphi 0, %s29
      %s46 = sphi 0, %s30
      %s50 = sphi 0, %s50
      %s52 = sphi 0, %s50
      %s53 = sphi 0, %s52
      %s67 = sphi 0, %s53
      %s71 = sphi 0, %s71
      %s73 = sphi 0, %s71
      %s74 = sphi 0, %s73
      %s88 = sphi 0, %s74
      %s92 = sphi 0, %s92
      %s94 = sphi 0, %s92
      %s95 = sphi 0, %s94
      %s109 = sphi 0, %s95
      %s115 = sphi 0, %s117
      %s118 = sphi 0, %s115
      %s119 = sphi 0, %s118
      %s135 = sphi 0, %s119
    $region4: #{tpu_custom_call.1} parent=1 // loop_header_branch
      %19 = sbr.rel (%p17) target = $region8
    $region5: #{tpu_custom_call.1} parent=1 // loop_body
      %s21 = ssub.s32 %s16, 1
      %s22 = ssub.s32 %s16, 2
      %s23 = sadd.s32 %s16, 1
      %s24 = ssub.s32 %s16, %s23
      %p25 = scmp.eq.s32.totalorder %s24, 0
      %s27 = sadd.s32 %s26, 1
      %s28 = scalar_select %p25, %s26, %s27
      %p31 = pneg %p25
      %p32 = scmp.eq.s32.totalorder %s16, 1
      %p33 = por %p31, %p32
      %p34 = scmp.ne.s32.totalorder %s26, %s29
      %p35 = scmp.eq.s32.totalorder %s16, 0
      %p36 = por %p34, %p35
      %p37 = scmp.ne.s32.totalorder %s26, %s29
      %p38 = scmp.eq.s32.totalorder %s21, 1
      %p39 = por %p37, %p38
      %p40 = scmp.ne.s32.totalorder %s29, %s30
      %p41 = scmp.eq.s32.totalorder %s21, 0
      %p42 = por %p40, %p41
      %p43 = scmp.ne.s32.totalorder %s29, %s30
      %p44 = scmp.eq.s32.totalorder %s22, 1
      %p45 = por %p43, %p44
      %p47 = scmp.ne.s32.totalorder %s30, %s46
      %p48 = scmp.eq.s32.totalorder %s22, 0
      %p49 = por %p47, %p48
      %s51 = sadd.s32 %s50, 1
      %p54 = scmp.eq.s32.totalorder %s16, 1
      %p55 = scmp.ne.s32.totalorder %s50, %s52
      %p56 = scmp.eq.s32.totalorder %s16, 0
      %p57 = por %p55, %p56
      %p58 = scmp.ne.s32.totalorder %s50, %s52
      %p59 = scmp.eq.s32.totalorder %s21, 1
      %p60 = por %p58, %p59
      %p61 = scmp.ne.s32.totalorder %s52, %s53
      %p62 = scmp.eq.s32.totalorder %s21, 0
      %p63 = por %p61, %p62
      %p64 = scmp.ne.s32.totalorder %s52, %s53
      %p65 = scmp.eq.s32.totalorder %s22, 1
      %p66 = por %p64, %p65
      %p68 = scmp.ne.s32.totalorder %s53, %s67
      %p69 = scmp.eq.s32.totalorder %s22, 0
      %p70 = por %p68, %p69
      %s72 = sadd.s32 %s71, 1
      %p75 = scmp.eq.s32.totalorder %s16, 1
      %p76 = scmp.ne.s32.totalorder %s71, %s73
      %p77 = scmp.eq.s32.totalorder %s16, 0
      %p78 = por %p76, %p77
      %p79 = scmp.ne.s32.totalorder %s71, %s73
      %p80 = scmp.eq.s32.totalorder %s21, 1
      %p81 = por %p79, %p80
      %p82 = scmp.ne.s32.totalorder %s73, %s74
      %p83 = scmp.eq.s32.totalorder %s21, 0
      %p84 = por %p82, %p83
      %p85 = scmp.ne.s32.totalorder %s73, %s74
      %p86 = scmp.eq.s32.totalorder %s22, 1
      %p87 = por %p85, %p86
      %p89 = scmp.ne.s32.totalorder %s74, %s88
      %p90 = scmp.eq.s32.totalorder %s22, 0
      %p91 = por %p89, %p90
      %s93 = sadd.s32 %s92, 1
      %p96 = scmp.eq.s32.totalorder %s16, 1
      %p97 = scmp.ne.s32.totalorder %s92, %s94
      %p98 = scmp.eq.s32.totalorder %s16, 0
      %p99 = por %p97, %p98
      %p100 = scmp.ne.s32.totalorder %s92, %s94
      %p101 = scmp.eq.s32.totalorder %s21, 1
      %p102 = por %p100, %p101
      %p103 = scmp.ne.s32.totalorder %s94, %s95
      %p104 = scmp.eq.s32.totalorder %s21, 0
      %p105 = por %p103, %p104
      %p106 = scmp.ne.s32.totalorder %s94, %s95
      %p107 = scmp.eq.s32.totalorder %s22, 1
      %p108 = por %p106, %p107
      %p110 = scmp.ne.s32.totalorder %s95, %s109
      %p111 = scmp.eq.s32.totalorder %s22, 0
      %p112 = por %p110, %p111
      %s113 = ssub.s32 %s16, %s23
      %p114 = scmp.eq.s32.totalorder %s113, 0
      %s116 = sadd.s32 %s115, 1
      %s117 = scalar_select %p114, %s115, %s116
      %p120 = pneg %p114
      %p121 = scmp.eq.s32.totalorder %s16, 1
      %p122 = por %p120, %p121
      %p123 = scmp.ne.s32.totalorder %s115, %s118
      %p124 = scmp.eq.s32.totalorder %s16, 0
      %p125 = por %p123, %p124
      %p126 = scmp.ne.s32.totalorder %s115, %s118
      %p127 = scmp.eq.s32.totalorder %s21, 1
      %p128 = por %p126, %p127
      %p129 = scmp.ne.s32.totalorder %s118, %s119
      %p130 = scmp.eq.s32.totalorder %s21, 0
      %p131 = por %p129, %p130
      %p132 = scmp.ne.s32.totalorder %s118, %s119
      %p133 = scmp.eq.s32.totalorder %s22, 1
      %p134 = por %p132, %p133
      %p136 = scmp.ne.s32.totalorder %s119, %s135
      %p137 = scmp.eq.s32.totalorder %s22, 0
      %p138 = por %p136, %p137
      %p139 = scmp.le.s32.totalorder 1, %s16
      %p140 = scmp.lt.s32.totalorder %s16, 3
      %p141 = pnand %p139, %p140
      %p142 = pneg %p141
      // Predicated region
      $region9: #{tpu_custom_call.1} parent=5 // pred_check
        _
      $region10: #{tpu_custom_call.1} parent=5 // pred_check_branch
        %144 = sbr.rel (%p141) target = $region12
      $region11: #{tpu_custom_call.1} parent=5 // pred_region
        %s145 = ssub.s32 %s16, 1
        // Predicated region
        $region13: #{tpu_custom_call.1} parent=11 // pred_check
          %p146 = pneg %p63
        $region14: #{tpu_custom_call.1} parent=11 // pred_check_branch
          %148 = sbr.rel (%p146) target = $region16
        $region15: #{tpu_custom_call.1} parent=11 // pred_region
          _
        $region16: #{tpu_custom_call.1} parent=11 // pred_fallthru
          _
        // Predicated region
        $region17: #{tpu_custom_call.1} parent=11 // pred_check
          %p149 = pneg %p84
        $region18: #{tpu_custom_call.1} parent=11 // pred_check_branch
          %151 = sbr.rel (%p149) target = $region20
        $region19: #{tpu_custom_call.1} parent=11 // pred_region
          _
        $region20: #{tpu_custom_call.1} parent=11 // pred_fallthru
          _
        // Predicated region
        $region21: #{tpu_custom_call.1} parent=11 // pred_check
          %p152 = pneg %p105
        $region22: #{tpu_custom_call.1} parent=11 // pred_check_branch
          %154 = sbr.rel (%p152) target = $region24
        $region23: #{tpu_custom_call.1} parent=11 // pred_region
          _
        $region24: #{tpu_custom_call.1} parent=11 // pred_fallthru
          _
      $region12: #{tpu_custom_call.1} parent=5 // pred_fallthru
        _
      %p155 = scmp.lt.s32.totalorder %s16, 2
      // Predicated region
      $region25: #{tpu_custom_call.1} parent=5 // pred_check
        %p156 = pneg %p155
      $region26: #{tpu_custom_call.1} parent=5 // pred_check_branch
        %158 = sbr.rel (%p156) target = $region28
      $region27: #{tpu_custom_call.1} parent=5 // pred_region
        // Predicated region
        $region29: #{tpu_custom_call.1} parent=27 // pred_check
          %p159 = pneg %p36
        $region30: #{tpu_custom_call.1} parent=27 // pred_check_branch
          %161 = sbr.rel (%p159) target = $region32
        $region31: #{tpu_custom_call.1} parent=27 // pred_region
          %s162 = sand.u32 %s26, 1
          %s163 = scalar_lea.sflag [#allocation3], %s162
          %s164 = sand.u32 %s26, 1
          %s165 = smul.addr %s164, 8
          %s166 = scalar_lea.vmem [#allocation2], %s165
          %168 = vsyncadd %s163, 0
          %s169 = smul.addr %s16, 8
          %s170 = scalar_lea.hbm %s0, %s169
          %s172 = sshll.u32 %s170, 4
          %s173 = int_to_ptr.hbm [resolvable:$true] %s172
          %s174 = sshll.u32 %s166, 4
          %s175 = int_to_ptr.vmem [resolvable:$true] %s174
          %177 = dma.hbm_to_vmem [thread:$0]  %s173, 128, %s175, %s163
        $region32: #{tpu_custom_call.1} parent=27 // pred_fallthru
          _
      $region28: #{tpu_custom_call.1} parent=5 // pred_fallthru
        _
      %p178 = scmp.le.s32.totalorder 1, %s16
      %p179 = scmp.lt.s32.totalorder %s16, 3
      %p180 = pnand %p178, %p179
      %p181 = pneg %p180
      // Predicated region
      $region33: #{tpu_custom_call.1} parent=5 // pred_check
        _
      $region34: #{tpu_custom_call.1} parent=5 // pred_check_branch
        %183 = sbr.rel (%p180) target = $region36
      $region35: #{tpu_custom_call.1} parent=5 // pred_region
        %s184 = ssub.s32 %s16, 1
        %s185 = sand.u32 %s29, 1
        %s186 = scalar_lea.sflag [#allocation3], %s185
        %s187 = sand.u32 %s29, 1
        %s188 = smul.addr %s187, 8
        %s189 = scalar_lea.vmem [#allocation2], %s188
        // Predicated region
        $region37: #{tpu_custom_call.1} parent=35 // pred_check
          %p190 = pneg %p42
        $region38: #{tpu_custom_call.1} parent=35 // pred_check_branch
          %192 = sbr.rel (%p190) target = $region40
        $region39: #{tpu_custom_call.1} parent=35 // pred_region
          %194 = dma.done %s186, 128
        $region40: #{tpu_custom_call.1} parent=35 // pred_fallthru
          _
        %s195 = sand.u32 %s29, 1
        %s196 = scalar_lea.sflag [#allocation3], %s195
        %s197 = sand.u32 %s29, 1
        %s198 = smul.addr %s197, 8
        %s199 = scalar_lea.vmem [#allocation2], %s198
        %p200 = pneg %p42
        %p201 = pneg %p39
        %p202 = pneg %p63
        %p203 = pneg %p60
        %p204 = pneg %p84
        %p205 = pneg %p81
        %p206 = pneg %p105
        %p207 = pneg %p102
        %p208 = pneg %p131
        %p209 = pneg %p128
        %s210 = sand.u32 %s118, 1
        %s211 = scalar_lea.sflag [#allocation4], %s210
        %s212 = sand.u32 %s118, 1
        %s213 = smul.addr %s212, 2
        %s214 = scalar_lea.vmem [#allocation5], %s213
        %v215 = vld [vmem:[%s189] sm:$0xff]
        %v216 = vld [vmem:[%s1] sm:$0xff]
        %v217 = vld [vmem:[%s1 + $0x8] sm:$0xff]
        %v218 = vld [vmem:[%s1 + $0x10] sm:$0xff]
        %v219 = vld [vmem:[%s1 + $0x18] sm:$0xff]
        %v220 = vld [vmem:[%s2] sm:$0x1]
        %v222 = vperm.slane %v220, 0
        %vm224 = vcmask 261120
        %v226 = vsel %vm224, %v215, 0
        %228 = vmatpush.msra.mxu0 0.0
        %229 = vmatpush.msra.mxu0 0.0
        %230 = vmatpush.msra.mxu0 0.0
        %231 = vmatpush.msra.mxu0 0.0
        %232 = vmatpush.msra.mxu0 0.0
        %233 = vmatpush.msra.mxu0 0.0
        %234 = vmatpush.msra.mxu0 0.0
        %235 = vmatpush.msra.mxu0 0.0
        %236 = vmatpush.msra.mxu0 0.0
        %237 = vmatpush.msra.mxu0 0.0
        %238 = vmatpush.msra.mxu0 0.0
        %239 = vmatpush.msra.mxu0 0.0
        %240 = vmatpush.msra.mxu0 %v219
        %241 = vmatpush.msra.mxu0 %v218
        %242 = vmatpush.msra.mxu0 %v217
        %243 = vmatpush.msra.mxu0 %v216
        %244 = vmatmul.f32.gmra.mxu0 %v226
        %v245 = vpop.f32.mrf.mxu0
        %v246 = vadd.f32 %v222, %v245
        %247 = vdwg.mxu0
        %v248 = vtanh.pop %v246
        %v249 = vld [vmem:[%s3] sm:$0xff]
        %v250 = vld [vmem:[%s3 + $0x8] sm:$0xff]
        %v251 = vld [vmem:[%s3 + $0x10] sm:$0xff]
        %v252 = vld [vmem:[%s3 + $0x18] sm:$0xff]
        %v254 = vsel %vm224, %v248, 0
        %256 = vmatpush.msra.mxu0 0.0
        %257 = vmatpush.msra.mxu0 0.0
        %258 = vmatpush.msra.mxu0 0.0
        %259 = vmatpush.msra.mxu0 0.0
        %260 = vmatpush.msra.mxu0 0.0
        %261 = vmatpush.msra.mxu0 0.0
        %262 = vmatpush.msra.mxu0 0.0
        %263 = vmatpush.msra.mxu0 0.0
        %264 = vmatpush.msra.mxu0 0.0
        %265 = vmatpush.msra.mxu0 0.0
        %266 = vmatpush.msra.mxu0 0.0
        %267 = vmatpush.msra.mxu0 0.0
        %268 = vmatpush.msra.mxu0 %v252
        %269 = vmatpush.msra.mxu0 %v251
        %270 = vmatpush.msra.mxu0 %v250
        %271 = vmatpush.msra.mxu0 %v249
        %272 = vmatmul.f32.gmra.mxu0 %v254
        %v273 = vpop.f32.mrf.mxu0
        %v274 = vadd.f32 0.0, %v273
        %275 = vdwg.mxu0
        %276 = vxpose.xlu0.b32.start [1/16] %v274, 128
        %277 = vxpose.xlu0.b32.cont [2/16] 0.0, 128
        %278 = vxpose.xlu0.b32.cont [3/16] 0.0, 128
        %279 = vxpose.xlu0.b32.cont [4/16] 0.0, 128
        %280 = vxpose.xlu0.b32.cont [5/16] 0.0, 128
        %281 = vxpose.xlu0.b32.cont [6/16] 0.0, 128
        %282 = vxpose.xlu0.b32.cont [7/16] 0.0, 128
        %283 = vxpose.xlu0.b32.cont [8/16] 0.0, 128
        %284 = vxpose.xlu0.b32.cont [9/16] 0.0, 128
        %285 = vxpose.xlu0.b32.cont [10/16] 0.0, 128
        %286 = vxpose.xlu0.b32.cont [11/16] 0.0, 128
        %287 = vxpose.xlu0.b32.cont [12/16] 0.0, 128
        %288 = vxpose.xlu0.b32.cont [13/16] 0.0, 128
        %289 = vxpose.xlu0.b32.cont [14/16] 0.0, 128
        %290 = vxpose.xlu0.b32.cont [15/16] 0.0, 128
        %291 = vxpose.xlu0.b32.end [16/16] 0.0, 128
        %v292 = vpop.trf.xlu0
        %v293 = vpop.trf.xlu0
        %v294 = vpop.trf.xlu0
        %v295 = vpop.trf.xlu0
        %v296 = vpop.trf.xlu0
        %v297 = vpop.trf.xlu0
        %v298 = vpop.trf.xlu0
        %v299 = vpop.trf.xlu0
        %v300 = vpop.trf.xlu0
        %v301 = vpop.trf.xlu0
        %v302 = vpop.trf.xlu0
        %v303 = vpop.trf.xlu0
        %v304 = vpop.trf.xlu0
        %v305 = vpop.trf.xlu0
        %v306 = vpop.trf.xlu0
        %v307 = vpop.trf.xlu0
        %v308 = vmul.f32 %v292, 1.442695
        %v309 = vpow.pop %v308
        %vm310 = vcmask 58368
        %v311 = vsel %vm310, %v309, 0.0
        %312 = vadd.xlane.f32.xlu0 %v311
        %v313 = vpop.xlane.xlu0 %312
        %v314 = vadd.f32 %v313, 1e-09
        %v315 = vrcp.pop %v314
        %v316 = vmul.f32 %v309, %v315
        %317 = vst.msk [vmem:[%s214] sm:$0x3] %vm310, %v316
        %s318 = sand.u32 %s118, 1
        %s319 = scalar_lea.sflag [#allocation4], %s318
        %s320 = sand.u32 %s118, 1
        %s321 = smul.addr %s320, 2
        %s322 = scalar_lea.vmem [#allocation5], %s321
        // Predicated region
        $region41: #{tpu_custom_call.1} parent=35 // pred_check
          %p323 = pneg %p128
        $region42: #{tpu_custom_call.1} parent=35 // pred_check_branch
          %325 = sbr.rel (%p323) target = $region44
        $region43: #{tpu_custom_call.1} parent=35 // pred_region
          %327 = vsyncadd %s319, 0
          %s328 = smul.addr %s21, 2
          %s329 = scalar_lea.hbm %s4, %s328
          %s331 = sshll.u32 %s322, 4
          %s332 = int_to_ptr.vmem [resolvable:$true] %s331
          %s333 = sshll.u32 %s329, 4
          %s334 = int_to_ptr.hbm [resolvable:$true] %s333
          %336 = dma.vmem_to_hbm [thread:$0]  %s332, 32, %s334, %s319
        $region44: #{tpu_custom_call.1} parent=35 // pred_fallthru
          _
      $region36: #{tpu_custom_call.1} parent=5 // pred_fallthru
        _
      %p337 = scmp.le.s32.totalorder 2, %s16
      // Predicated region
      $region45: #{tpu_custom_call.1} parent=5 // pred_check
        %p338 = pneg %p337
      $region46: #{tpu_custom_call.1} parent=5 // pred_check_branch
        %340 = sbr.rel (%p338) target = $region48
      $region47: #{tpu_custom_call.1} parent=5 // pred_region
        %s341 = ssub.s32 %s16, 2
        // Predicated region
        $region49: #{tpu_custom_call.1} parent=47 // pred_check
          %p342 = pneg %p134
        $region50: #{tpu_custom_call.1} parent=47 // pred_check_branch
          %344 = sbr.rel (%p342) target = $region52
        $region51: #{tpu_custom_call.1} parent=47 // pred_region
          %s345 = sand.u32 %s119, 1
          %s346 = scalar_lea.sflag [#allocation4], %s345
          %s347 = sand.u32 %s119, 1
          %s348 = smul.addr %s347, 2
          %s349 = scalar_lea.vmem [#allocation5], %s348
          %351 = dma.done %s346, 32
        $region52: #{tpu_custom_call.1} parent=47 // pred_fallthru
          _
      $region48: #{tpu_custom_call.1} parent=5 // pred_fallthru
        _
    $region6: #{tpu_custom_call.1} parent=1 // loop_footer
      %s20 = sadd.s32 1, %s16
    $region7: #{tpu_custom_call.1} parent=1 // loop_footer_branch
      %15 = sbr.rel target = $region3
    $region8: #{tpu_custom_call.1} parent=1 // loop_exit
      _
    %352 = vsyncpa [#allocation3], 1
    %s353 = scalar_lea.sflag [#allocation3], 1
    %354 = vsyncpa %s353, 1
    %355 = vsyncpa [#allocation4], 1
    %s356 = scalar_lea.sflag [#allocation4], 1
    %357 = vsyncpa %s356, 1

</llo_original>
